<compile_context>
chip_gen: v6e
topology: v6e:2x2x1
jax: 0.10.0
libtpu: 0.0.40
codegen_flags: <defaults>
</compile_context>

<pallas_src>
import jax
import jax.numpy as jnp
import numpy as np
from jax.experimental import pallas as pl
from jax.experimental.pallas import tpu as pltpu

H, W = 66, 45           # image size used by the original loader

LANES = 1024            # lane-dense last dim (multiple of 128)
ROW_ALIGN = 32          # row granularity: covers uint8 (32,128) native tiling
MAX_BLOCK_ROWS = 256    # 256 x 1024 x 4B = 1 MiB f32 output per stream per step


# ---------------------------------------------------------------------------
# Flat lane-dense slab helpers (wrapper-side layout plumbing, not compute).
# ---------------------------------------------------------------------------
def _slab_geometry(total_elems):
    rows = -(-total_elems // LANES)
    block_rows = min(MAX_BLOCK_ROWS, -(-rows // ROW_ALIGN) * ROW_ALIGN)
    padded_rows = -(-rows // block_rows) * block_rows
    return padded_rows, block_rows


def _to_slab(x, padded_rows):
    flat = x.reshape(-1)
    pad = padded_rows * LANES - flat.size
    return jnp.pad(flat, (0, pad)).reshape(padded_rows, LANES)


def _from_slab(slab, shape, total_elems):
    return slab.reshape(-1)[:total_elems].reshape(shape)


# ---------------------------------------------------------------------------
# forward(): identity.  Default path = no kernel (zero copy).
# ---------------------------------------------------------------------------
def nc_loader_forward(tot_sem, tot_depth):
    """Exact nc_loader.forward() semantics: return [tot_sem, tot_depth]."""
    return [tot_sem, tot_depth]


def _identity_kernel(sem_ref, depth_ref, sem_o_ref, depth_o_ref):
    sem_o_ref[...] = sem_ref[...]
    depth_o_ref[...] = depth_ref[...]


def nc_loader_forward_pallas(tot_sem, tot_depth):
    """forward() behind a Pallas kernel boundary.

    Uses input_output_aliases so the pass-through is (near) in-place instead
    of a full HBM->VMEM->HBM round trip; lane-dense blocks otherwise.
    """
    assert tot_sem.shape == tot_depth.shape and tot_sem.dtype == tot_depth.dtype
    total = tot_sem.size
    padded_rows, block_rows = _slab_geometry(total)
    sem2d = _to_slab(tot_sem, padded_rows)
    dep2d = _to_slab(tot_depth, padded_rows)

    spec = pl.BlockSpec((block_rows, LANES), lambda i: (i, 0))
    sem_o, dep_o = pl.pallas_call(
        _identity_kernel,
        out_shape=(
            jax.ShapeDtypeStruct(sem2d.shape, sem2d.dtype),
            jax.ShapeDtypeStruct(dep2d.shape, dep2d.dtype),
        ),
        grid=(padded_rows // block_rows,),
        in_specs=[spec, spec],
        out_specs=(spec, spec),
        input_output_aliases={0: 0, 1: 1},
        compiler_params=pltpu.CompilerParams(
            dimension_semantics=("parallel",)
        ),
    )(sem2d, dep2d)

    return [
        _from_slab(sem_o, tot_sem.shape, total),
        _from_slab(dep_o, tot_depth.shape, total),
    ]


# ---------------------------------------------------------------------------
# The module's transform (ToTensor + Normalize(0.5, 0.5)) as one fused,
# lane-dense, large-block elementwise kernel over BOTH image stacks.
# forward() does not call it, but do_transform=True defines it on the module.
# ---------------------------------------------------------------------------
def _transform_kernel(sem_ref, depth_ref, sem_o_ref, depth_o_ref):
    scale = jnp.float32(2.0 / 255.0)  # fold (x/255 - 0.5)/0.5 into one FMA
    sem = sem_ref[...].astype(jnp.float32) * scale - 1.0
    dep = depth_ref[...].astype(jnp.float32) * scale - 1.0
    sem_o_ref[...] = sem.astype(sem_o_ref.dtype)
    depth_o_ref[...] = dep.astype(depth_o_ref.dtype)


def nc_loader_transform(tot_sem, tot_depth, out_dtype=jnp.float32):
    """Apply ToTensor + Normalize(0.5, 0.5) to both uint8 stacks.

    out_dtype=jnp.bfloat16 halves writeback traffic if downstream allows;
    float32 (default) matches PyTorch exactly.
    """
    assert tot_sem.shape == tot_depth.shape
    total = tot_sem.size
    padded_rows, block_rows = _slab_geometry(total)
    sem2d = _to_slab(tot_sem, padded_rows)
    dep2d = _to_slab(tot_depth, padded_rows)

    spec = pl.BlockSpec((block_rows, LANES), lambda i: (i, 0))
    sem_o, dep_o = pl.pallas_call(
        _transform_kernel,
        out_shape=(
            jax.ShapeDtypeStruct((padded_rows, LANES), out_dtype),
            jax.ShapeDtypeStruct((padded_rows, LANES), out_dtype),
        ),
        grid=(padded_rows // block_rows,),
        in_specs=[spec, spec],
        out_specs=(spec, spec),
        compiler_params=pltpu.CompilerParams(
            dimension_semantics=("parallel",)
        ),
    )(sem2d, dep2d)

    return (
        _from_slab(sem_o, tot_sem.shape, total),
        _from_slab(dep_o, tot_depth.shape, total),
    )


if __name__ == "__main__":
    # Deterministic synthetic "image" stacks standing in for the SEM / Depth
    # PNGs (the original module reads files; data is synthesized here).
    key = jax.random.PRNGKey(0)
    k_sem, k_depth = jax.random.split(key)
    n_imgs = 2
    tot_sem = jax.random.randint(
        k_sem, (n_imgs, 1, H, W), 0, 256, dtype=jnp.int32
    ).astype(jnp.uint8)
    tot_depth = jax.random.randint(
        k_depth, (n_imgs, 1, H, W), 0, 256, dtype=jnp.int32
    ).astype(jnp.uint8)

    # 1) forward(): identity, zero-copy default path.
    sem_out, depth_out = nc_loader_forward(tot_sem, tot_depth)
    np.testing.assert_array_equal(np.asarray(sem_out), np.asarray(tot_sem))
    np.testing.assert_array_equal(np.asarray(depth_out), np.asarray(tot_depth))

    # 2) forward() behind an aliased Pallas kernel boundary.
    sem_k, depth_k = nc_loader_forward_pallas(tot_sem, tot_depth)
    jax.block_until_ready(sem_k)
    jax.block_until_ready(depth_k)
    assert sem_k.dtype == jnp.uint8 and depth_k.dtype == jnp.uint8
    np.testing.assert_array_equal(np.asarray(sem_k), np.asarray(tot_sem))
    np.testing.assert_array_equal(np.asarray(depth_k), np.asarray(tot_depth))

    # 3) The module's transform, fused over both stacks.
    sem_n, depth_n = nc_loader_transform(tot_sem, tot_depth)
    jax.block_until_ready(sem_n)
    jax.block_until_ready(depth_n)
    ref_sem = (np.asarray(tot_sem).astype(np.float32) / 255.0 - 0.5) / 0.5
    ref_dep = (np.asarray(tot_depth).astype(np.float32) / 255.0 - 0.5) / 0.5
    np.testing.assert_allclose(np.asarray(sem_n), ref_sem, rtol=1e-5, atol=1e-5)
    np.testing.assert_allclose(np.asarray(depth_n), ref_dep, rtol=1e-5, atol=1e-5)

    print("KERNEL_OK")
</pallas_src>

<mosaic_0001>
module attributes {stable_mosaic.version = 11 : i64} {
  func.func @_identity_kernel(%arg0: i32, %arg1: memref<32x1024xi8, #tpu.memory_space<vmem>>, %arg2: memref<32x1024xi8, #tpu.memory_space<vmem>>, %arg3: memref<32x1024xi8, #tpu.memory_space<vmem>>, %arg4: memref<32x1024xi8, #tpu.memory_space<vmem>>) attributes {dimension_semantics = [#tpu.dimension_semantics<parallel>], iteration_bounds = array<i64: 1>, scalar_prefetch = 0 : i64, scratch_operands = 0 : i64, tpu.core_type = #tpu.core_type<tc>, window_params = [{transform_indices = @transform_0, window_bounds = array<i64: 32, 1024>}, {transform_indices = @transform_1, window_bounds = array<i64: 32, 1024>}, {transform_indices = @transform_2, window_bounds = array<i64: 32, 1024>}, {transform_indices = @transform_3, window_bounds = array<i64: 32, 1024>}]} {
    %c0 = arith.constant 0 : index
    %c0_0 = arith.constant 0 : index
    %0 = vector.load %arg1[%c0, %c0_0] : memref<32x1024xi8, #tpu.memory_space<vmem>>, vector<32x1024xi8>
    %c0_1 = arith.constant 0 : index
    %c0_2 = arith.constant 0 : index
    %1 = vector.load %arg3[%c0_1, %c0_2] : memref<32x1024xi8, #tpu.memory_space<vmem>>, vector<32x1024xi8>
    tpu.vector_store %arg3[%c0_1, %c0_2], %0 {strides = array<i32>} : memref<32x1024xi8, #tpu.memory_space<vmem>>, vector<32x1024xi8>,
    %c0_3 = arith.constant 0 : index
    %c0_4 = arith.constant 0 : index
    %2 = vector.load %arg2[%c0_3, %c0_4] : memref<32x1024xi8, #tpu.memory_space<vmem>>, vector<32x1024xi8>
    %c0_5 = arith.constant 0 : index
    %c0_6 = arith.constant 0 : index
    %3 = vector.load %arg4[%c0_5, %c0_6] : memref<32x1024xi8, #tpu.memory_space<vmem>>, vector<32x1024xi8>
    tpu.vector_store %arg4[%c0_5, %c0_6], %2 {strides = array<i32>} : memref<32x1024xi8, #tpu.memory_space<vmem>>, vector<32x1024xi8>,
    return
  }
  func.func @transform_0(%arg0: i32) -> (i32, i32) {
    %c0_i32 = arith.constant 0 : i32
    %c0_i32_0 = arith.constant 0 : i32
    return %arg0, %c0_i32 : i32, i32
  }
  func.func @transform_1(%arg0: i32) -> (i32, i32) {
    %c0_i32 = arith.constant 0 : i32
    %c0_i32_0 = arith.constant 0 : i32
    return %arg0, %c0_i32 : i32, i32
  }
  func.func @transform_2(%arg0: i32) -> (i32, i32) {
    %c0_i32 = arith.constant 0 : i32
    %c0_i32_0 = arith.constant 0 : i32
    return %arg0, %c0_i32 : i32, i32
  }
  func.func @transform_3(%arg0: i32) -> (i32, i32) {
    %c0_i32 = arith.constant 0 : i32
    %c0_i32_0 = arith.constant 0 : i32
    return %arg0, %c0_i32 : i32, i32
  }
}

</mosaic_0001>

<llo_original>
// kernel: tpu_custom_call.1
$region0: #{tpu_custom_call.1}
  #allocation0 [shape = 'u32[]', space=smem, size = 0x4, offset = 0x4, fixed_abs, tag = 'smem constant byte address 0x4 - core index']
  #allocation1 [shape = 'u32[144,128]{1,0:T(1,128)}', space=vmem, size = 0x12000, scoped, tag = 'internal scratch']
  %s0 = inlined_call_operand.hbm [shape: u8[32,1024], index: 0, kind: input, shape index: {}, may-alias: {0,2}]
  %s1 = inlined_call_operand.hbm [shape: u8[32,1024], index: 1, kind: input, shape index: {}, may-alias: {1,3}]
  %s2 = inlined_call_operand.hbm [shape: u8[32,1024], index: 2, kind: output, shape index: {0}, may-alias: {0,2}]
  %s3 = inlined_call_operand.hbm [shape: u8[32,1024], index: 3, kind: output, shape index: {1}, may-alias: {1,3}]
  %4 = xla_tuple %s2, %s3
  %s5 = sld [smem:[#allocation0]]
  $region34: #{tpu_custom_call.1} parent=0
    _
  %s7 = ssub.s32 1, %s5
  %s8 = scalar_select 0, %s7, %s5
  $region1: #{tpu_custom_call.1} parent=0
    #allocation2 [shape = 'u8[32768]{0}', space=vmem, size = 0x8000, scoped, tag = 'input window, operand 0, single buffered']
    #allocation3 [shape = 's32[1]{0}', space=sflag, size = 0x4, scoped, tag = 'scoped memory for tpu_custom_call.1']
    #allocation4 [shape = 's32[1]{0}', space=sflag, size = 0x4, scoped, tag = 'scoped memory for tpu_custom_call.1']
    #allocation5 [shape = 'u8[32768]{0}', space=vmem, size = 0x8000, scoped, tag = 'input window, operand 1, single buffered']
    #allocation6 [shape = 's32[1]{0}', space=sflag, size = 0x4, scoped, tag = 'scoped memory for tpu_custom_call.1']
    #allocation7 [shape = 'u8[32768]{0}', space=vmem, size = 0x8000, scoped, tag = 'output window, operand 0, single buffered']
    #allocation8 [shape = 'u8[32768]{0}', space=vmem, size = 0x8000, scoped, tag = 'output window, operand 1, single buffered']
    #allocation9 [shape = 's32[1]{0}', space=sflag, size = 0x4, scoped, tag = 'scoped memory for tpu_custom_call.1']
    %9 = vsyncpa [#allocation3], 0
    %10 = vsyncpa [#allocation6], 0
    %11 = vsyncpa [#allocation4], 0
    %12 = vsyncpa [#allocation9], 0
    // Predicated region
    $region2: #{tpu_custom_call.1} parent=1 // pred_check
      _
    $region3: #{tpu_custom_call.1} parent=1 // pred_check_branch
      %14 = sbr.rel (0) target = $region5
    $region4: #{tpu_custom_call.1} parent=1 // pred_region
      %s16 = ssub.s32 1024, 1024
      %17 = vsyncadd [#allocation3], %s16
      %s19 = sshll.u32 [#allocation2], 4
      %s20 = int_to_ptr.vmem [resolvable:$true] %s19
      %22 = dma.hbm_to_vmem [thread:$0]  %s0, 1024, %s20, [#allocation3]
    $region5: #{tpu_custom_call.1} parent=1 // pred_fallthru
      _
    // Predicated region
    $region6: #{tpu_custom_call.1} parent=1 // pred_check
      _
    $region7: #{tpu_custom_call.1} parent=1 // pred_check_branch
      %24 = sbr.rel (0) target = $region9
    $region8: #{tpu_custom_call.1} parent=1 // pred_region
      %s26 = ssub.s32 1024, 1024
      %27 = vsyncadd [#allocation6], %s26
      %s29 = sshll.u32 [#allocation5], 4
      %s30 = int_to_ptr.vmem [resolvable:$true] %s29
      %32 = dma.hbm_to_vmem [thread:$0]  %s1, 1024, %s30, [#allocation6]
    $region9: #{tpu_custom_call.1} parent=1 // pred_fallthru
      _
    // Predicated region
    $region10: #{tpu_custom_call.1} parent=1 // pred_check
      _
    $region11: #{tpu_custom_call.1} parent=1 // pred_check_branch
      %34 = sbr.rel (0) target = $region13
    $region12: #{tpu_custom_call.1} parent=1 // pred_region
      %35 = dma.done [#allocation3], 1024
    $region13: #{tpu_custom_call.1} parent=1 // pred_fallthru
      _
    // Predicated region
    $region14: #{tpu_custom_call.1} parent=1 // pred_check
      _
    $region15: #{tpu_custom_call.1} parent=1 // pred_check_branch
      %37 = sbr.rel (0) target = $region17
    $region16: #{tpu_custom_call.1} parent=1 // pred_region
      %38 = dma.done [#allocation6], 1024
    $region17: #{tpu_custom_call.1} parent=1 // pred_fallthru
      _
    %v39 = vld [vmem:[#allocation2] sm:$0xff]
    %v40 = vld [vmem:[#allocation2 + $0x8] sm:$0xff]
    %v41 = vld [vmem:[#allocation2 + $0x10] sm:$0xff]
    %v42 = vld [vmem:[#allocation2 + $0x18] sm:$0xff]
    %v43 = vld [vmem:[#allocation2 + $0x20] sm:$0xff]
    %v44 = vld [vmem:[#allocation2 + $0x28] sm:$0xff]
    %v45 = vld [vmem:[#allocation2 + $0x30] sm:$0xff]
    %v46 = vld [vmem:[#allocation2 + $0x38] sm:$0xff]
    %47 = vst [vmem:[#allocation7] sm:$0xff] %v39
    %48 = vst [vmem:[#allocation7 + $0x8] sm:$0xff] %v40
    %49 = vst [vmem:[#allocation7 + $0x10] sm:$0xff] %v41
    %50 = vst [vmem:[#allocation7 + $0x18] sm:$0xff] %v42
    %51 = vst [vmem:[#allocation7 + $0x20] sm:$0xff] %v43
    %52 = vst [vmem:[#allocation7 + $0x28] sm:$0xff] %v44
    %53 = vst [vmem:[#allocation7 + $0x30] sm:$0xff] %v45
    %54 = vst [vmem:[#allocation7 + $0x38] sm:$0xff] %v46
    %v55 = vld [vmem:[#allocation5] sm:$0xff]
    %v56 = vld [vmem:[#allocation5 + $0x8] sm:$0xff]
    %v57 = vld [vmem:[#allocation5 + $0x10] sm:$0xff]
    %v58 = vld [vmem:[#allocation5 + $0x18] sm:$0xff]
    %v59 = vld [vmem:[#allocation5 + $0x20] sm:$0xff]
    %v60 = vld [vmem:[#allocation5 + $0x28] sm:$0xff]
    %v61 = vld [vmem:[#allocation5 + $0x30] sm:$0xff]
    %v62 = vld [vmem:[#allocation5 + $0x38] sm:$0xff]
    %63 = vst [vmem:[#allocation8] sm:$0xff] %v55
    %64 = vst [vmem:[#allocation8 + $0x8] sm:$0xff] %v56
    %65 = vst [vmem:[#allocation8 + $0x10] sm:$0xff] %v57
    %66 = vst [vmem:[#allocation8 + $0x18] sm:$0xff] %v58
    %67 = vst [vmem:[#allocation8 + $0x20] sm:$0xff] %v59
    %68 = vst [vmem:[#allocation8 + $0x28] sm:$0xff] %v60
    %69 = vst [vmem:[#allocation8 + $0x30] sm:$0xff] %v61
    %70 = vst [vmem:[#allocation8 + $0x38] sm:$0xff] %v62
    // Predicated region
    $region18: #{tpu_custom_call.1} parent=1 // pred_check
      _
    $region19: #{tpu_custom_call.1} parent=1 // pred_check_branch
      %72 = sbr.rel (0) target = $region21
    $region20: #{tpu_custom_call.1} parent=1 // pred_region
      %s74 = ssub.s32 1024, 1024
      %75 = vsyncadd [#allocation4], %s74
      %s77 = sshll.u32 [#allocation7], 4
      %s78 = int_to_ptr.vmem [resolvable:$true] %s77
      %80 = dma.vmem_to_hbm [thread:$0]  %s78, 1024, %s2, [#allocation4]
    $region21: #{tpu_custom_call.1} parent=1 // pred_fallthru
      _
    // Predicated region
    $region22: #{tpu_custom_call.1} parent=1 // pred_check
      _
    $region23: #{tpu_custom_call.1} parent=1 // pred_check_branch
      %82 = sbr.rel (0) target = $region25
    $region24: #{tpu_custom_call.1} parent=1 // pred_region
      %s84 = ssub.s32 1024, 1024
      %85 = vsyncadd [#allocation9], %s84
      %s87 = sshll.u32 [#allocation8], 4
      %s88 = int_to_ptr.vmem [resolvable:$true] %s87
      %90 = dma.vmem_to_hbm [thread:$0]  %s88, 1024, %s3, [#allocation9]
    $region25: #{tpu_custom_call.1} parent=1 // pred_fallthru
      _
    // Predicated region
    $region26: #{tpu_custom_call.1} parent=1 // pred_check
      _
    $region27: #{tpu_custom_call.1} parent=1 // pred_check_branch
      %92 = sbr.rel (0) target = $region29
    $region28: #{tpu_custom_call.1} parent=1 // pred_region
      %93 = dma.done [#allocation4], 1024
    $region29: #{tpu_custom_call.1} parent=1 // pred_fallthru
      _
    // Predicated region
    $region30: #{tpu_custom_call.1} parent=1 // pred_check
      _
    $region31: #{tpu_custom_call.1} parent=1 // pred_check_branch
      %95 = sbr.rel (0) target = $region33
    $region32: #{tpu_custom_call.1} parent=1 // pred_region
      %96 = dma.done [#allocation9], 1024
    $region33: #{tpu_custom_call.1} parent=1 // pred_fallthru
      _
    %97 = vsyncpa [#allocation3], 1
    %98 = vsyncpa [#allocation6], 1
    %99 = vsyncpa [#allocation4], 1
    %100 = vsyncpa [#allocation9], 1

</llo_original>
